<compile_context>
chip_gen: v7x
topology: tpu7x:2x2x1
jax: 0.10.0
libtpu: 0.0.40
codegen_flags: <defaults>
</compile_context>

<pallas_src>
import functools

import jax
import jax.numpy as jnp
from jax.experimental import pallas as pl
from jax.experimental.pallas import tpu as pltpu

NEG_INF = float("-inf")


# ----------------------------- in-kernel helpers -----------------------------

def _topk_rows(x, k):
    """Top-k values of `x` along axis=0 as a list of k rows of shape (1, d2).

    Iterative argmax + exact-one masking (matches torch.topk tie semantics).
    The iota is hoisted out of the loop (JAX does not CSE broadcast_in_dim).
    k == 1 degenerates to a single max reduce."""
    rows = [jnp.max(x, axis=0, keepdims=True)]
    if k > 1:
        work = x
        iota = jax.lax.broadcasted_iota(jnp.int32, x.shape, 0)   # hoisted once
        for _ in range(k - 1):
            idx = jnp.expand_dims(jnp.argmax(work, axis=0), 0)
            work = jnp.where(iota == idx, NEG_INF, work)
            rows.append(jnp.max(work, axis=0, keepdims=True))
    return rows


def _topk_sum_cols(x, k):
    """Sum of the top-k values of `x` along axis=1 -> shape (d1, 1)."""
    total = jnp.max(x, axis=1, keepdims=True)
    if k > 1:
        work = x
        iota = jax.lax.broadcasted_iota(jnp.int32, x.shape, 1)   # hoisted once
        for _ in range(k - 1):
            idx = jnp.expand_dims(jnp.argmax(work, axis=1), 1)
            work = jnp.where(iota == idx, NEG_INF, work)
            total = total + jnp.max(work, axis=1, keepdims=True)
    return total


# --------------------------------- kernels -----------------------------------

def _csls_reduce_kernel(sim_ref, avg1_ref, avg0_ref, topk_sc, *, k: int):
    """Pass 1: per row tile, write avg1; stream column top-k into scratch -> avg0."""
    i = pl.program_id(0)
    n = pl.num_programs(0)
    sim = sim_ref[...].astype(jnp.float32)                      # (tm, d2)

    # Row-wise top-k mean: exact within the tile (full d2 width is present).
    avg1_ref[...] = (_topk_sum_cols(sim, k) * (1.0 / k)).astype(avg1_ref.dtype)

    # Running column top-k buffer, persistent across the (sequential) grid axis.
    @pl.when(i == 0)
    def _init():
        topk_sc[...] = jnp.full(topk_sc.shape, NEG_INF, dtype=topk_sc.dtype)

    # Tile-local column top-k candidates, then a streaming insertion-merge into
    # the sorted running buffer: k*k VPU compare/select pairs on (1, d2) rows.
    cands = _topk_rows(sim, k)
    buf = topk_sc[...]                                          # (k, d2)
    buf_rows = [buf[j:j + 1, :] for j in range(k)]
    for cand in cands:
        cur = cand
        for j in range(k):
            hi = jnp.maximum(buf_rows[j], cur)
            cur = jnp.minimum(buf_rows[j], cur)
            buf_rows[j] = hi
    topk_sc[...] = jnp.concatenate(buf_rows, axis=0)

    @pl.when(i == n - 1)
    def _finalize():
        s = jnp.sum(topk_sc[...], axis=0, keepdims=True)        # (1, d2)
        avg0_ref[...] = (s * (1.0 / k)).astype(avg0_ref.dtype)


def _csls_apply_kernel(sim_ref, avg0_ref, avg1_ref, out_ref):
    """Pass 2: lane-dense elementwise apply out = 2*sim - avg0 - avg1."""
    sim = sim_ref[...].astype(jnp.float32)
    res = 2.0 * sim - avg0_ref[...].astype(jnp.float32) - avg1_ref[...].astype(jnp.float32)
    out_ref[...] = res.astype(out_ref.dtype)


# --------------------------------- wrapper ------------------------------------

def _pick_row_tile(d1: int, d2: int, max_tile_bytes: int) -> int:
    """Largest multiple-of-8 row count dividing d1 with rows*d2*4B <= budget."""
    row_bytes = max(d2 * 4, 1)
    cap = max(8, max_tile_bytes // row_bytes)
    for t in (1024, 512, 256, 128, 64, 32, 16, 8):
        if t <= cap and t <= d1 and d1 % t == 0:
            return t
    return d1   # small / non-multiple-of-8 d1: single full-extent tile


def csls_pallas(sim: jax.Array, k: int = 1, *, row_tile: int | None = None) -> jax.Array:
    """CSLS-normalize a (d1, d2) similarity matrix. Matches CSLSNormalization(k)."""
    d1, d2 = sim.shape
    if not (1 <= k <= min(d1, d2)):
        raise ValueError(f"k={k} must be in [1, min(d1, d2)] = [1, {min(d1, d2)}]")
    f32 = jnp.float32
    mib = 1024 * 1024

    if row_tile is not None:
        t = int(row_tile)
        if t >= d1 or d1 % t != 0 or t % 8 != 0:
            t = d1
        tm1 = tm2 = t
    else:
        tm1 = _pick_row_tile(d1, d2, max_tile_bytes=4 * mib)    # reduction pass
        tm2 = _pick_row_tile(d1, d2, max_tile_bytes=8 * mib)    # apply pass (>=512 rows when possible)

    def vmem_limit(needed: int) -> int:
        # at least 32 MiB (safe everywhere), capped at 48 MiB (< v7x 64 MiB physical)
        return int(min(48 * mib, max(32 * mib, needed)))

    # ---- pass 1: reductions (avg1 per tile; streaming column top-k -> avg0) ----
    vmem1 = 2 * tm1 * d2 * 4 + 8 * d2 * 4 + 4 * (2 * d2 + 2 * tm1) + 4 * mib
    avg1, avg0 = pl.pallas_call(
        functools.partial(_csls_reduce_kernel, k=k),
        out_shape=(jax.ShapeDtypeStruct((d1, 1), f32),
                   jax.ShapeDtypeStruct((1, d2), f32)),
        grid=(d1 // tm1,),
        in_specs=[pl.BlockSpec((tm1, d2), lambda i: (i, 0))],
        out_specs=(pl.BlockSpec((tm1, 1), lambda i: (i, 0)),
                   pl.BlockSpec((1, d2), lambda i: (0, 0))),      # resident accumulator
        scratch_shapes=[pltpu.VMEM((k, d2), f32)],
        compiler_params=pltpu.CompilerParams(
            dimension_semantics=("arbitrary",),                   # scratch carries across tiles
            vmem_limit_bytes=vmem_limit(vmem1)),
    )(sim)

    # ---- pass 2: elementwise apply (lane-dense, parallel across TensorCores) ----
    vmem2 = 4 * tm2 * d2 * 4 + 4 * (2 * d2 + 2 * tm2) + 4 * mib
    out = pl.pallas_call(
        _csls_apply_kernel,
        out_shape=jax.ShapeDtypeStruct((d1, d2), sim.dtype),
        grid=(d1 // tm2,),
        in_specs=[pl.BlockSpec((tm2, d2), lambda i: (i, 0)),
                  pl.BlockSpec((1, d2), lambda i: (0, 0)),
                  pl.BlockSpec((tm2, 1), lambda i: (i, 0))],
        out_specs=pl.BlockSpec((tm2, d2), lambda i: (i, 0)),
        compiler_params=pltpu.CompilerParams(
            dimension_semantics=("parallel",),
            vmem_limit_bytes=vmem_limit(vmem2)),
    )(sim, avg0, avg1)
    return out


# -------------------------------- reference -----------------------------------

def _csls_ref(sim: jax.Array, k: int) -> jax.Array:
    """Pure-JAX reference mirroring the torch implementation (mean over the k axis)."""
    top0 = jax.lax.top_k(sim.T, k)[0]                 # (d2, k): top-k along dim=0
    avg0 = jnp.mean(top0, axis=1)[None, :]            # (1, d2)
    top1 = jax.lax.top_k(sim, k)[0]                   # (d1, k): top-k along dim=1
    avg1 = jnp.mean(top1, axis=1, keepdims=True)      # (d1, 1)
    return 2.0 * sim - avg0 - avg1


if __name__ == "__main__":
    key = jax.random.PRNGKey(0)
    d1, d2 = 64, 128
    sim = jax.random.normal(key, (d1, d2), dtype=jnp.float32)

    # Default module config: CSLSNormalization(k=1), auto tiling (single tile here).
    out_k1 = csls_pallas(sim, k=1)
    jax.block_until_ready(out_k1)
    ref_k1 = _csls_ref(sim, k=1)
    assert out_k1.shape == (d1, d2) and out_k1.dtype == jnp.float32
    assert jnp.allclose(out_k1, ref_k1, atol=1e-5, rtol=1e-5), "k=1 mismatch"

    # General top-k path (k=3).
    out_k3 = csls_pallas(sim, k=3)
    jax.block_until_ready(out_k3)
    ref_k3 = _csls_ref(sim, k=3)
    assert jnp.allclose(out_k3, ref_k3, atol=1e-5, rtol=1e-5), "k=3 mismatch"

    # Force multiple row tiles (grid=(4,)) to exercise the streaming cross-tile
    # column-top-k merge and the pl.when init/finalize paths.
    out_k1_t = csls_pallas(sim, k=1, row_tile=16)
    out_k3_t = csls_pallas(sim, k=3, row_tile=16)
    jax.block_until_ready((out_k1_t, out_k3_t))
    assert jnp.allclose(out_k1_t, ref_k1, atol=1e-5, rtol=1e-5), "tiled k=1 mismatch"
    assert jnp.allclose(out_k3_t, ref_k3, atol=1e-5, rtol=1e-5), "tiled k=3 mismatch"

    print("KERNEL_OK")
</pallas_src>

<mosaic_0001>
module attributes {stable_mosaic.version = 11 : i64} {
  func.func @_csls_reduce_kernel(%arg0: i32, %arg1: memref<64x128xf32, #tpu.memory_space<vmem>>, %arg2: memref<64x1xf32, #tpu.memory_space<vmem>>, %arg3: memref<1x128xf32, #tpu.memory_space<vmem>>, %arg4: memref<1x128xf32, #tpu.memory_space<vmem>>) attributes {dimension_semantics = [#tpu.dimension_semantics<arbitrary>], iteration_bounds = array<i64: 1>, scalar_prefetch = 0 : i64, scratch_operands = 1 : i64, tpu.core_type = #tpu.core_type<tc>, window_params = [{transform_indices = @transform_0, window_bounds = array<i64: 64, 128>}, {transform_indices = @transform_1, window_bounds = array<i64: 64, 1>}, {pipeline_mode = #tpu.pipeline_mode<synchronous>, transform_indices = @transform_2, window_bounds = array<i64: 1, 128>}]} {
    %c0 = arith.constant 0 : index
    %c0_0 = arith.constant 0 : index
    %0 = vector.load %arg1[%c0, %c0_0] : memref<64x128xf32, #tpu.memory_space<vmem>>, vector<64x128xf32>
    %cst = arith.constant dense<0xFF800000> : vector<64xf32>
    %1 = vector.multi_reduction <maximumf>, %0, %cst [1] : vector<64x128xf32> to vector<64xf32>
    %2 = vector.shape_cast %1 : vector<64xf32> to vector<64x1xf32>
    %cst_1 = arith.constant 1.000000e+00 : f32
    %3 = vector.broadcast %cst_1 : f32 to vector<64x1xf32>
    %4 = arith.mulf %2, %3 : vector<64x1xf32>
    %c0_2 = arith.constant 0 : index
    %c0_3 = arith.constant 0 : index
    %5 = vector.load %arg2[%c0_2, %c0_3] : memref<64x1xf32, #tpu.memory_space<vmem>>, vector<64x1xf32>
    tpu.vector_store %arg2[%c0_2, %c0_3], %4 {strides = array<i32>} : memref<64x1xf32, #tpu.memory_space<vmem>>, vector<64x1xf32>,
    %c0_i32 = arith.constant 0 : i32
    %6 = arith.cmpi eq, %arg0, %c0_i32 : i32
    %7 = arith.extui %6 : i1 to i32
    %c0_i32_4 = arith.constant 0 : i32
    %8 = arith.cmpi ne, %7, %c0_i32_4 : i32
    scf.if %8 {
      %cst_12 = arith.constant 0xFF800000 : f32
      %17 = vector.broadcast %cst_12 : f32 to vector<1x128xf32>
      %c0_13 = arith.constant 0 : index
      %c0_14 = arith.constant 0 : index
      %18 = vector.load %arg4[%c0_13, %c0_14] : memref<1x128xf32, #tpu.memory_space<vmem>>, vector<1x128xf32>
      tpu.vector_store %arg4[%c0_13, %c0_14], %17 {strides = array<i32>} : memref<1x128xf32, #tpu.memory_space<vmem>>, vector<1x128xf32>,
    } else {
    }
    %cst_5 = arith.constant dense<0xFF800000> : vector<128xf32>
    %9 = vector.multi_reduction <maximumf>, %0, %cst_5 [0] : vector<64x128xf32> to vector<128xf32>
    %10 = vector.shape_cast %9 : vector<128xf32> to vector<1x128xf32>
    %c0_6 = arith.constant 0 : index
    %c0_7 = arith.constant 0 : index
    %11 = vector.load %arg4[%c0_6, %c0_7] : memref<1x128xf32, #tpu.memory_space<vmem>>, vector<1x128xf32>
    %12 = arith.maximumf %11, %10 : vector<1x128xf32>
    %c0_8 = arith.constant 0 : index
    %c0_9 = arith.constant 0 : index
    %13 = vector.load %arg4[%c0_8, %c0_9] : memref<1x128xf32, #tpu.memory_space<vmem>>, vector<1x128xf32>
    tpu.vector_store %arg4[%c0_8, %c0_9], %12 {strides = array<i32>} : memref<1x128xf32, #tpu.memory_space<vmem>>, vector<1x128xf32>,
    %c0_i32_10 = arith.constant 0 : i32
    %14 = arith.cmpi eq, %arg0, %c0_i32_10 : i32
    %15 = arith.extui %14 : i1 to i32
    %c0_i32_11 = arith.constant 0 : i32
    %16 = arith.cmpi ne, %15, %c0_i32_11 : i32
    scf.if %16 {
      %c0_12 = arith.constant 0 : index
      %c0_13 = arith.constant 0 : index
      %17 = vector.load %arg4[%c0_12, %c0_13] : memref<1x128xf32, #tpu.memory_space<vmem>>, vector<1x128xf32>
      %cst_14 = arith.constant dense<0.000000e+00> : vector<128xf32>
      %18 = vector.multi_reduction <add>, %17, %cst_14 [0] : vector<1x128xf32> to vector<128xf32>
      %19 = vector.shape_cast %18 : vector<128xf32> to vector<1x128xf32>
      %cst_15 = arith.constant 1.000000e+00 : f32
      %20 = vector.broadcast %cst_15 : f32 to vector<1x128xf32>
      %21 = arith.mulf %19, %20 : vector<1x128xf32>
      %c0_16 = arith.constant 0 : index
      %c0_17 = arith.constant 0 : index
      %22 = vector.load %arg3[%c0_16, %c0_17] : memref<1x128xf32, #tpu.memory_space<vmem>>, vector<1x128xf32>
      tpu.vector_store %arg3[%c0_16, %c0_17], %21 {strides = array<i32>} : memref<1x128xf32, #tpu.memory_space<vmem>>, vector<1x128xf32>,
    } else {
    }
    return
  }
  func.func @transform_0(%arg0: i32) -> (i32, i32) {
    %c0_i32 = arith.constant 0 : i32
    %c0_i32_0 = arith.constant 0 : i32
    return %arg0, %c0_i32 : i32, i32
  }
  func.func @transform_1(%arg0: i32) -> (i32, i32) {
    %c0_i32 = arith.constant 0 : i32
    %c0_i32_0 = arith.constant 0 : i32
    return %arg0, %c0_i32 : i32, i32
  }
  func.func @transform_2(%arg0: i32) -> (i32, i32) {
    %c0_i32 = arith.constant 0 : i32
    %c0_i32_0 = arith.constant 0 : i32
    %c0_i32_1 = arith.constant 0 : i32
    return %c0_i32, %c0_i32_0 : i32, i32
  }
}

</mosaic_0001>

<llo_original>
// kernel: tpu_custom_call.1
$region0: #{tpu_custom_call.1}
  #allocation0 [shape = 'u32[]', space=smem, size = 0x4, offset = 0x4, fixed_abs, tag = 'smem constant byte address 0x4 - core index']
  #allocation1 [shape = 'u32[144,128]{1,0:T(1,128)}', space=vmem, size = 0x12000, scoped, tag = 'internal scratch']
  #allocation2 [shape = 'f32[1,128]{1,0:T(1,128)}', space=vmem, size = 0x200, scoped, tag = 'scratch operand']
  %s0 = inlined_call_operand.hbm [shape: f32[64,128], index: 0, kind: input, shape index: {}]
  %s1 = inlined_call_operand.vmem [shape: f32[64,1], index: 1, kind: output, shape index: {0}]
  %s2 = inlined_call_operand.hbm [shape: f32[1,128], index: 2, kind: output, shape index: {1}]
  %3 = xla_tuple %s1, %s2
  %s4 = sld [smem:[#allocation0]]
  $region34: #{tpu_custom_call.1} parent=0
    _
  %s6 = ssub.s32 1, %s4
  %s7 = scalar_select 0, %s6, %s4
  $region1: #{tpu_custom_call.1} parent=0
    #allocation3 [shape = 'u8[32768]{0}', space=vmem, size = 0x8000, scoped, tag = 'input window, operand 0, single buffered']
    #allocation4 [shape = 's32[1]{0}', space=sflag, size = 0x4, scoped, tag = 'scoped memory for tpu_custom_call.1']
    #allocation5 [shape = 's32[1]{0}', space=sflag, size = 0x4, scoped, tag = 'scoped memory for tpu_custom_call.1']
    #allocation6 [shape = 'u8[512]{0}', space=vmem, size = 0x400, scoped, tag = 'output window, operand 1, single buffered']
    %8 = vsyncpa [#allocation4], 0
    %9 = vsyncpa [#allocation5], 0
    // Predicated region
    $region2: #{tpu_custom_call.1} parent=1 // pred_check
      _
    $region3: #{tpu_custom_call.1} parent=1 // pred_check_branch
      %11 = sbr.rel (0) target = $region5
    $region4: #{tpu_custom_call.1} parent=1 // pred_region
      %s13 = ssub.s32 1024, 1024
      %14 = vsyncadd [#allocation4], %s13
      %s15 = sshll.u32 [#allocation3], 4
      %s16 = int_to_ptr.vmem [resolvable:$true] %s15
      %21 = dma.hbm_to_vmem [thread:$0]  %s0, 1024, %s16, [#allocation4], 128, 128, 8
    $region5: #{tpu_custom_call.1} parent=1 // pred_fallthru
      _
    // Predicated region
    $region6: #{tpu_custom_call.1} parent=1 // pred_check
      _
    $region7: #{tpu_custom_call.1} parent=1 // pred_check_branch
      %23 = sbr.rel (0) target = $region9
    $region8: #{tpu_custom_call.1} parent=1 // pred_region
      %24 = dma.done [#allocation4], 1024
    $region9: #{tpu_custom_call.1} parent=1 // pred_fallthru
      _
    %v25 = vld [vmem:[#allocation3] sm:$0xff]
    %v26 = vld [vmem:[#allocation3 + $0x8] sm:$0xff]
    %v27 = vld [vmem:[#allocation3 + $0x10] sm:$0xff]
    %v28 = vld [vmem:[#allocation3 + $0x18] sm:$0xff]
    %v29 = vld [vmem:[#allocation3 + $0x20] sm:$0xff]
    %v30 = vld [vmem:[#allocation3 + $0x28] sm:$0xff]
    %v31 = vld [vmem:[#allocation3 + $0x30] sm:$0xff]
    %v32 = vld [vmem:[#allocation3 + $0x38] sm:$0xff]
    %33 = vmax.xlane.f32.xlu0 %v25
    %v34 = vpop.xlane.xlu0 %33
    %35 = vmax.xlane.f32.xlu0 %v26
    %v36 = vpop.xlane.xlu0 %35
    %37 = vmax.xlane.f32.xlu0 %v27
    %v38 = vpop.xlane.xlu0 %37
    %39 = vmax.xlane.f32.xlu0 %v28
    %v40 = vpop.xlane.xlu0 %39
    %41 = vmax.xlane.f32.xlu0 %v29
    %v42 = vpop.xlane.xlu0 %41
    %43 = vmax.xlane.f32.xlu0 %v30
    %v44 = vpop.xlane.xlu0 %43
    %45 = vmax.xlane.f32.xlu0 %v31
    %v46 = vpop.xlane.xlu0 %45
    %47 = vmax.xlane.f32.xlu0 %v32
    %v48 = vpop.xlane.xlu0 %47
    %vm49 = vcmask 7168
    %50 = vst.msk [vmem:[%s1] sm:$0xff] %vm49, %v34
    %51 = vst.msk [vmem:[%s1 + $0x8] sm:$0xff] %vm49, %v36
    %52 = vst.msk [vmem:[%s1 + $0x10] sm:$0xff] %vm49, %v38
    %53 = vst.msk [vmem:[%s1 + $0x18] sm:$0xff] %vm49, %v40
    %54 = vst.msk [vmem:[%s1 + $0x20] sm:$0xff] %vm49, %v42
    %55 = vst.msk [vmem:[%s1 + $0x28] sm:$0xff] %vm49, %v44
    %56 = vst.msk [vmem:[%s1 + $0x30] sm:$0xff] %vm49, %v46
    %57 = vst.msk [vmem:[%s1 + $0x38] sm:$0xff] %vm49, %v48
    %p58 = scmp.eq.s32.totalorder 0, 0
    // Predicated region
    $region10: #{tpu_custom_call.1} parent=1 // pred_check
      %p59 = pneg %p58
    $region11: #{tpu_custom_call.1} parent=1 // pred_check_branch
      %61 = sbr.rel (%p59) target = $region13
    $region12: #{tpu_custom_call.1} parent=1 // pred_region
      %62 = vst [vmem:[#allocation2] sm:$0x1] -inf
    $region13: #{tpu_custom_call.1} parent=1 // pred_fallthru
      _
    %v63 = vmax.f32 %v25, %v29
    %v64 = vmax.f32 %v26, %v30
    %v65 = vmax.f32 %v27, %v31
    %v66 = vmax.f32 %v28, %v32
    %v67 = vmax.f32 %v63, %v64
    %v68 = vmax.f32 %v65, %v66
    %v69 = vmax.f32 %v67, %v68
    %v70 = vrot.slane %v69, 4
    %v71 = vmax.f32 %v69, %v70
    %v72 = vrot.slane %v71, 2
    %v73 = vmax.f32 %v71, %v72
    %v74 = vrot.slane %v73, 1
    %v75 = vmax.f32 %v73, %v74
    %v76 = vld [vmem:[#allocation2] sm:$0x1]
    %v77 = vmax.f32 %v76, %v75
    %78 = vst [vmem:[#allocation2] sm:$0x1] %v77
    // Predicated region
    $region14: #{tpu_custom_call.1} parent=1 // pred_check
      %p79 = pneg %p58
    $region15: #{tpu_custom_call.1} parent=1 // pred_check_branch
      %81 = sbr.rel (%p79) target = $region17
    $region16: #{tpu_custom_call.1} parent=1 // pred_region
      %v82 = vld [vmem:[#allocation2] sm:$0x1]
      %v83 = vadd.f32 %v82, 0.0
      %84 = vst [vmem:[#allocation6] sm:$0x1] %v83
    $region17: #{tpu_custom_call.1} parent=1 // pred_fallthru
      _
    // Predicated region
    $region18: #{tpu_custom_call.1} parent=1 // pred_check
      _
    $region19: #{tpu_custom_call.1} parent=1 // pred_check_branch
      %86 = sbr.rel (0) target = $region21
    $region20: #{tpu_custom_call.1} parent=1 // pred_region
      _
    $region21: #{tpu_custom_call.1} parent=1 // pred_fallthru
      _
    // Predicated region
    $region22: #{tpu_custom_call.1} parent=1 // pred_check
      _
    $region23: #{tpu_custom_call.1} parent=1 // pred_check_branch
      %88 = sbr.rel (0) target = $region25
    $region24: #{tpu_custom_call.1} parent=1 // pred_region
      %s90 = ssub.s32 16, 16
      %91 = vsyncadd [#allocation5], %s90
      %s93 = sshll.u32 [#allocation6], 4
      %s94 = int_to_ptr.vmem [resolvable:$true] %s93
      %96 = dma.vmem_to_hbm [thread:$0]  %s94, 16, %s2, [#allocation5]
    $region25: #{tpu_custom_call.1} parent=1 // pred_fallthru
      _
    // Predicated region
    $region26: #{tpu_custom_call.1} parent=1 // pred_check
      _
    $region27: #{tpu_custom_call.1} parent=1 // pred_check_branch
      %98 = sbr.rel (0) target = $region29
    $region28: #{tpu_custom_call.1} parent=1 // pred_region
      _
    $region29: #{tpu_custom_call.1} parent=1 // pred_fallthru
      _
    // Predicated region
    $region30: #{tpu_custom_call.1} parent=1 // pred_check
      _
    $region31: #{tpu_custom_call.1} parent=1 // pred_check_branch
      %100 = sbr.rel (0) target = $region33
    $region32: #{tpu_custom_call.1} parent=1 // pred_region
      %101 = dma.done [#allocation5], 16
    $region33: #{tpu_custom_call.1} parent=1 // pred_fallthru
      _
    %102 = vsyncpa [#allocation4], 1
    %103 = vsyncpa [#allocation5], 1

</llo_original>
